<compile_context>
chip_gen: v7x
topology: tpu7x:2x2x1
jax: 0.10.0
libtpu: 0.0.40
codegen_flags: <defaults>
</compile_context>

<pallas_src>
import jax
import jax.numpy as jnp
from jax import lax
from jax.experimental import pallas as pl
from jax.experimental.pallas import tpu as pltpu


def _interaction_gate_kernel(action_ref, goal_ref, ah_ref, gh_ref,
                             wpack_ref, w2_ref, w3_ref, bias_ref, out_ref):
    n = action_ref.shape[0]          # number of agents
    E, H = w2_ref.shape              # distance-embedding dim, hidden dim

    # Sublane-packed biases: each row starts at lane offset 0 (no lane rotates).
    b1 = bias_ref[0:1, :E]           # (1, E)
    b2 = bias_ref[1:2, :H]           # (1, H)
    b3 = bias_ref[2:3, :H]           # (1, H)

    a = action_ref[...]              # (n, 2)
    g = goal_ref[...]                # (n, 2)

    # ---------------- gate branch ----------------
    # Layer-1 is separable: dist[i,j] @ W1 = pj[j] + pi[i].
    # K=4 is far too small to pay an MXU push + result-FIFO drain, so the
    # projection is 8 unrolled VPU multiply-adds against sublane rows of wpack
    # (rows 0..3 = j-term weights, rows 4..7 = i-term weights).
    pj = (a[:, 0:1] * wpack_ref[0:1, :] + a[:, 1:2] * wpack_ref[1:2, :]
          + g[:, 0:1] * wpack_ref[2:3, :] + g[:, 1:2] * wpack_ref[3:4, :])   # (n, E)
    pi = (a[:, 0:1] * wpack_ref[4:5, :] + a[:, 1:2] * wpack_ref[5:6, :]
          + g[:, 0:1] * wpack_ref[6:7, :] + g[:, 1:2] * wpack_ref[7:8, :])   # (n, E)

    # Pair grid built directly as (n*n, E), row r = i*n + j:
    # tile pj (j fastest) and repeat pi (i slowest).  The collapsing reshape
    # keeps the lane dim (E) untouched, so the layout is unchanged (no copy).
    pj_pair = jnp.broadcast_to(pj[None, :, :], (n, n, E)).reshape(n * n, E)
    pi_pair = jnp.broadcast_to(pi[:, None, :], (n, n, E)).reshape(n * n, E)
    h1 = jnp.maximum(pj_pair + pi_pair + b1, 0.0)                            # (n*n, E)

    gate = jax.nn.sigmoid(
        jnp.dot(h1, w2_ref[...], preferred_element_type=jnp.float32) + b2)   # (n*n, H)

    # ---------------- hidden-state branch ----------------
    # Project both hidden-state stacks through W3 with ONE matmul, tanh once.
    hid = jnp.concatenate([ah_ref[...], gh_ref[...]], axis=0)                # (2n, H)
    th = jnp.tanh(jnp.dot(hid, w3_ref[...],
                          preferred_element_type=jnp.float32) + b3)          # (2n, H)
    th_act = th[:n]                  # tanh(action_hidden @ W3 + b3)          (n, H)
    th_goal = th[n:]                 # tanh(goal_hidden  @ W3 + b3)           (n, H)

    # Diagonal (i == j) select from a single (n*n, 1) iota: r % (n+1) == 0.
    r = lax.broadcasted_iota(jnp.int32, (n * n, 1), 0)
    is_diag = (r % (n + 1)) == 0
    ta = jnp.broadcast_to(th_act[None, :, :], (n, n, H)).reshape(n * n, H)   # row -> th_act[j]
    tg = jnp.broadcast_to(th_goal[None, :, :], (n, n, H)).reshape(n * n, H)  # row -> th_goal[j]
    hs = jnp.where(is_diag, tg, ta)                                          # (n*n, H)

    out_ref[...] = (gate * hs).astype(out_ref.dtype)                         # plain 2-D vst


def pack_interaction_gate_params(params):
    """One-time (model-init) re-packing of the Linear parameters.

    Hoisted out of the per-call path so the forward is a single pallas_call
    with no extra XLA dispatches.  Linear weights are in [in, out] layout.
    """
    w1, b1, w2, b2, w3, b3 = params
    E = w1.shape[1]
    H = w3.shape[1]
    # dist columns: [action_j (0:2), action_i (2:4), goal_j (4:6), goal_i (6:8)]
    w_j = jnp.concatenate([w1[0:2], w1[4:6]], axis=0)        # (4, E) j-term rows
    w_i = jnp.concatenate([w1[2:4], w1[6:8]], axis=0)        # (4, E) i-term rows
    w_pack = jnp.concatenate([w_j, w_i], axis=0)             # (8, E) sublane-packed
    W = max(E, H)
    bias_pack = jnp.zeros((3, W), jnp.float32)
    bias_pack = bias_pack.at[0, :E].set(b1.astype(jnp.float32))
    bias_pack = bias_pack.at[1, :H].set(b2.astype(jnp.float32))
    bias_pack = bias_pack.at[2, :H].set(b3.astype(jnp.float32))
    return (w_pack.astype(jnp.float32),
            w2.astype(jnp.float32),
            w3.astype(jnp.float32),
            bias_pack)


def interaction_gate_forward(action_hidden_state, goal_hidden_state, goal,
                             action, packed_params):
    """Per-step forward: one pallas_call + a metadata-only output reshape."""
    w_pack, w2, w3, bias_pack = packed_params
    n, H = action_hidden_state.shape
    E = w2.shape[0]
    M = n * n

    # Advisory cost estimate (matmuls + elementwise tail + transcendentals).
    flops = (8 * n * E                 # layer-1 unrolled VPU projection
             + 3 * M * E               # pair add + bias + relu
             + 2 * M * E * H           # h1  @ W2
             + 2 * (2 * n) * H * H     # hid @ W3
             + 6 * M * H)              # bias / select / gate*hs tail
    transcendentals = M * H + 2 * n * H            # sigmoid + tanh
    bytes_accessed = 4 * (action.size + goal.size
                          + action_hidden_state.size + goal_hidden_state.size
                          + w_pack.size + w2.size + w3.size + bias_pack.size
                          + M * H)

    out2d = pl.pallas_call(
        _interaction_gate_kernel,
        out_shape=jax.ShapeDtypeStruct((M, H), jnp.float32),
        in_specs=[pl.BlockSpec(memory_space=pltpu.MemorySpace.VMEM)] * 8,
        out_specs=pl.BlockSpec(memory_space=pltpu.MemorySpace.VMEM),
        cost_estimate=pl.CostEstimate(
            flops=int(flops),
            transcendentals=int(transcendentals),
            bytes_accessed=int(bytes_accessed)),
    )(action, goal, action_hidden_state, goal_hidden_state,
      w_pack, w2, w3, bias_pack)

    # (n*n, H) -> (n, n, H): contiguous row-major split, metadata-only in XLA.
    return out2d.reshape(n, n, H)


def _reference_forward(action_hidden_state, goal_hidden_state, goal, action, params):
    """Pure-JAX reference mirroring the PyTorch forward()."""
    w1, b1, w2, b2, w3, b3 = params
    n, H = action_hidden_state.shape
    action1 = jnp.broadcast_to(action[None, :, :], (n, n, 2))   # action[j]
    action2 = jnp.broadcast_to(action[:, None, :], (n, n, 2))   # action[i]
    goal1 = jnp.broadcast_to(goal[None, :, :], (n, n, 2))       # goal[j]
    goal2 = jnp.broadcast_to(goal[:, None, :], (n, n, 2))       # goal[i]
    dist = jnp.concatenate([action1, action2, goal1, goal2], axis=-1)     # (n, n, 8)
    gate = jax.nn.sigmoid(jnp.maximum(dist @ w1 + b1, 0.0) @ w2 + b2)

    eye = jnp.eye(n, dtype=action_hidden_state.dtype)[:, :, None]
    goal_action = (goal_hidden_state[None, :, :] * eye
                   + action_hidden_state[None, :, :] * (1.0 - eye))
    return gate * jnp.tanh(goal_action @ w3 + b3)


if __name__ == "__main__":
    # Small, forward-consistent shapes.
    n = 8                       # number of agents
    E = 16                      # distance_embedding_dim
    H = 32                      # action_decoder_hidden_dim

    key = jax.random.PRNGKey(0)
    k = jax.random.split(key, 10)

    # Deterministic synthetic parameters (Linear stored as [in, out] + bias).
    w1 = jax.random.normal(k[0], (8, E), jnp.float32) * 0.2    # distEmbedding
    b1 = jax.random.normal(k[1], (E,), jnp.float32) * 0.05
    w2 = jax.random.normal(k[2], (E, H), jnp.float32) * 0.2    # gateFC
    b2 = jax.random.normal(k[3], (H,), jnp.float32) * 0.05
    w3 = jax.random.normal(k[4], (H, H), jnp.float32) * 0.2    # hidden_state_fc
    b3 = jax.random.normal(k[5], (H,), jnp.float32) * 0.05
    params = (w1, b1, w2, b2, w3, b3)

    # Inputs.
    action_hidden_state = jax.random.normal(k[6], (n, H), jnp.float32)
    goal_hidden_state = jax.random.normal(k[7], (n, H), jnp.float32)
    goal = jax.random.normal(k[8], (n, 2), jnp.float32)
    action = jax.random.normal(k[9], (n, 2), jnp.float32)

    # Init-time packing (once), then a launch-lean jitted forward.
    packed = jax.tree_util.tree_map(jax.block_until_ready,
                                    pack_interaction_gate_params(params))
    fwd = jax.jit(interaction_gate_forward)
    out = jax.block_until_ready(
        fwd(action_hidden_state, goal_hidden_state, goal, action, packed))

    ref = _reference_forward(action_hidden_state, goal_hidden_state,
                             goal, action, params)
    assert out.shape == (n, n, H)
    assert jnp.allclose(out, ref, atol=1e-4, rtol=1e-4), "mismatch vs reference"

    print("KERNEL_OK")
</pallas_src>

<mosaic_0001>
module attributes {stable_mosaic.version = 11 : i64} {
  func.func @_interaction_gate_kernel(%arg0: memref<8x2xf32, #tpu.memory_space<vmem>>, %arg1: memref<8x2xf32, #tpu.memory_space<vmem>>, %arg2: memref<8x32xf32, #tpu.memory_space<vmem>>, %arg3: memref<8x32xf32, #tpu.memory_space<vmem>>, %arg4: memref<8x16xf32, #tpu.memory_space<vmem>>, %arg5: memref<16x32xf32, #tpu.memory_space<vmem>>, %arg6: memref<32x32xf32, #tpu.memory_space<vmem>>, %arg7: memref<3x32xf32, #tpu.memory_space<vmem>>, %arg8: memref<64x32xf32, #tpu.memory_space<vmem>>) attributes {dimension_semantics = [], scalar_prefetch = 0 : i64, scratch_operands = 0 : i64, tpu.core_type = #tpu.core_type<tc>} {
    %c0 = arith.constant 0 : index
    %c0_0 = arith.constant 0 : index
    %0 = vector.load %arg7[%c0, %c0_0] : memref<3x32xf32, #tpu.memory_space<vmem>>, vector<1x16xf32>
    %c1 = arith.constant 1 : index
    %c0_1 = arith.constant 0 : index
    %1 = vector.load %arg7[%c1, %c0_1] : memref<3x32xf32, #tpu.memory_space<vmem>>, vector<1x32xf32>
    %c2 = arith.constant 2 : index
    %c0_2 = arith.constant 0 : index
    %2 = vector.load %arg7[%c2, %c0_2] : memref<3x32xf32, #tpu.memory_space<vmem>>, vector<1x32xf32>
    %c0_3 = arith.constant 0 : index
    %c0_4 = arith.constant 0 : index
    %3 = vector.load %arg0[%c0_3, %c0_4] : memref<8x2xf32, #tpu.memory_space<vmem>>, vector<8x2xf32>
    %c0_5 = arith.constant 0 : index
    %c0_6 = arith.constant 0 : index
    %4 = vector.load %arg1[%c0_5, %c0_6] : memref<8x2xf32, #tpu.memory_space<vmem>>, vector<8x2xf32>
    %5 = vector.extract_strided_slice %3 {offsets = [0, 0], sizes = [8, 1], strides = [1, 1]} : vector<8x2xf32> to vector<8x1xf32>
    %c0_7 = arith.constant 0 : index
    %c0_8 = arith.constant 0 : index
    %6 = vector.load %arg4[%c0_7, %c0_8] : memref<8x16xf32, #tpu.memory_space<vmem>>, vector<1x16xf32>
    %7 = vector.broadcast %5 : vector<8x1xf32> to vector<8x16xf32>
    %8 = vector.broadcast %6 : vector<1x16xf32> to vector<8x16xf32>
    %9 = arith.mulf %7, %8 : vector<8x16xf32>
    %10 = vector.extract_strided_slice %3 {offsets = [0, 1], sizes = [8, 1], strides = [1, 1]} : vector<8x2xf32> to vector<8x1xf32>
    %c1_9 = arith.constant 1 : index
    %c0_10 = arith.constant 0 : index
    %11 = vector.load %arg4[%c1_9, %c0_10] : memref<8x16xf32, #tpu.memory_space<vmem>>, vector<1x16xf32>
    %12 = vector.broadcast %10 : vector<8x1xf32> to vector<8x16xf32>
    %13 = vector.broadcast %11 : vector<1x16xf32> to vector<8x16xf32>
    %14 = arith.mulf %12, %13 : vector<8x16xf32>
    %15 = arith.addf %9, %14 : vector<8x16xf32>
    %16 = vector.extract_strided_slice %4 {offsets = [0, 0], sizes = [8, 1], strides = [1, 1]} : vector<8x2xf32> to vector<8x1xf32>
    %c2_11 = arith.constant 2 : index
    %c0_12 = arith.constant 0 : index
    %17 = vector.load %arg4[%c2_11, %c0_12] : memref<8x16xf32, #tpu.memory_space<vmem>>, vector<1x16xf32>
    %18 = vector.broadcast %16 : vector<8x1xf32> to vector<8x16xf32>
    %19 = vector.broadcast %17 : vector<1x16xf32> to vector<8x16xf32>
    %20 = arith.mulf %18, %19 : vector<8x16xf32>
    %21 = arith.addf %15, %20 : vector<8x16xf32>
    %22 = vector.extract_strided_slice %4 {offsets = [0, 1], sizes = [8, 1], strides = [1, 1]} : vector<8x2xf32> to vector<8x1xf32>
    %c3 = arith.constant 3 : index
    %c0_13 = arith.constant 0 : index
    %23 = vector.load %arg4[%c3, %c0_13] : memref<8x16xf32, #tpu.memory_space<vmem>>, vector<1x16xf32>
    %24 = vector.broadcast %22 : vector<8x1xf32> to vector<8x16xf32>
    %25 = vector.broadcast %23 : vector<1x16xf32> to vector<8x16xf32>
    %26 = arith.mulf %24, %25 : vector<8x16xf32>
    %27 = arith.addf %21, %26 : vector<8x16xf32>
    %28 = vector.extract_strided_slice %3 {offsets = [0, 0], sizes = [8, 1], strides = [1, 1]} : vector<8x2xf32> to vector<8x1xf32>
    %c4 = arith.constant 4 : index
    %c0_14 = arith.constant 0 : index
    %29 = vector.load %arg4[%c4, %c0_14] : memref<8x16xf32, #tpu.memory_space<vmem>>, vector<1x16xf32>
    %30 = vector.broadcast %28 : vector<8x1xf32> to vector<8x16xf32>
    %31 = vector.broadcast %29 : vector<1x16xf32> to vector<8x16xf32>
    %32 = arith.mulf %30, %31 : vector<8x16xf32>
    %33 = vector.extract_strided_slice %3 {offsets = [0, 1], sizes = [8, 1], strides = [1, 1]} : vector<8x2xf32> to vector<8x1xf32>
    %c5 = arith.constant 5 : index
    %c0_15 = arith.constant 0 : index
    %34 = vector.load %arg4[%c5, %c0_15] : memref<8x16xf32, #tpu.memory_space<vmem>>, vector<1x16xf32>
    %35 = vector.broadcast %33 : vector<8x1xf32> to vector<8x16xf32>
    %36 = vector.broadcast %34 : vector<1x16xf32> to vector<8x16xf32>
    %37 = arith.mulf %35, %36 : vector<8x16xf32>
    %38 = arith.addf %32, %37 : vector<8x16xf32>
    %39 = vector.extract_strided_slice %4 {offsets = [0, 0], sizes = [8, 1], strides = [1, 1]} : vector<8x2xf32> to vector<8x1xf32>
    %c6 = arith.constant 6 : index
    %c0_16 = arith.constant 0 : index
    %40 = vector.load %arg4[%c6, %c0_16] : memref<8x16xf32, #tpu.memory_space<vmem>>, vector<1x16xf32>
    %41 = vector.broadcast %39 : vector<8x1xf32> to vector<8x16xf32>
    %42 = vector.broadcast %40 : vector<1x16xf32> to vector<8x16xf32>
    %43 = arith.mulf %41, %42 : vector<8x16xf32>
    %44 = arith.addf %38, %43 : vector<8x16xf32>
    %45 = vector.extract_strided_slice %4 {offsets = [0, 1], sizes = [8, 1], strides = [1, 1]} : vector<8x2xf32> to vector<8x1xf32>
    %c7 = arith.constant 7 : index
    %c0_17 = arith.constant 0 : index
    %46 = vector.load %arg4[%c7, %c0_17] : memref<8x16xf32, #tpu.memory_space<vmem>>, vector<1x16xf32>
    %47 = vector.broadcast %45 : vector<8x1xf32> to vector<8x16xf32>
    %48 = vector.broadcast %46 : vector<1x16xf32> to vector<8x16xf32>
    %49 = arith.mulf %47, %48 : vector<8x16xf32>
    %50 = arith.addf %44, %49 : vector<8x16xf32>
    %51 = vector.shape_cast %27 : vector<8x16xf32> to vector<1x8x16xf32>
    %52 = vector.shape_cast %51 : vector<1x8x16xf32> to vector<1x8x16xf32>
    %53 = vector.broadcast %52 : vector<1x8x16xf32> to vector<8x8x16xf32>
    %54 = vector.shape_cast %53 : vector<8x8x16xf32> to vector<64x16xf32>
    %55 = vector.shape_cast %50 : vector<8x16xf32> to vector<8x1x16xf32>
    %56 = vector.shape_cast %55 : vector<8x1x16xf32> to vector<8x1x16xf32>
    %57 = vector.broadcast %56 : vector<8x1x16xf32> to vector<8x8x16xf32>
    %58 = vector.shape_cast %57 : vector<8x8x16xf32> to vector<64x16xf32>
    %59 = arith.addf %54, %58 : vector<64x16xf32>
    %60 = vector.broadcast %0 : vector<1x16xf32> to vector<64x16xf32>
    %61 = arith.addf %59, %60 : vector<64x16xf32>
    %cst = arith.constant 0.000000e+00 : f32
    %62 = vector.broadcast %cst : f32 to vector<64x16xf32>
    %63 = arith.maximumf %61, %62 : vector<64x16xf32>
    %c0_18 = arith.constant 0 : index
    %c0_19 = arith.constant 0 : index
    %64 = vector.load %arg5[%c0_18, %c0_19] : memref<16x32xf32, #tpu.memory_space<vmem>>, vector<16x32xf32>
    %cst_20 = arith.constant dense<0.000000e+00> : vector<64x32xf32>
    %65 = tpu.matmul %63, %64, %cst_20 {dimension_numbers = #tpu.dot_dimension_numbers<[1], [0], [0], [1], [0, 0, 1, 1], [], []>} : vector<64x16xf32>, vector<16x32xf32>, vector<64x32xf32> -> vector<64x32xf32>
    %66 = vector.broadcast %1 : vector<1x32xf32> to vector<64x32xf32>
    %67 = arith.addf %65, %66 : vector<64x32xf32>
    %68 = arith.negf %67 : vector<64x32xf32>
    %69 = math.exp %68 : vector<64x32xf32>
    %cst_21 = arith.constant 1.000000e+00 : f32
    %70 = vector.broadcast %cst_21 : f32 to vector<64x32xf32>
    %71 = arith.addf %70, %69 : vector<64x32xf32>
    %72 = arith.divf %70, %71 : vector<64x32xf32>
    %c0_22 = arith.constant 0 : index
    %c0_23 = arith.constant 0 : index
    %73 = vector.load %arg2[%c0_22, %c0_23] : memref<8x32xf32, #tpu.memory_space<vmem>>, vector<8x32xf32>
    %c0_24 = arith.constant 0 : index
    %c0_25 = arith.constant 0 : index
    %74 = vector.load %arg3[%c0_24, %c0_25] : memref<8x32xf32, #tpu.memory_space<vmem>>, vector<8x32xf32>
    %75 = tpu.concatenate %73, %74 in 0 : vector<8x32xf32>, vector<8x32xf32> -> vector<16x32xf32>
    %c0_26 = arith.constant 0 : index
    %c0_27 = arith.constant 0 : index
    %76 = vector.load %arg6[%c0_26, %c0_27] : memref<32x32xf32, #tpu.memory_space<vmem>>, vector<32x32xf32>
    %cst_28 = arith.constant dense<0.000000e+00> : vector<16x32xf32>
    %77 = tpu.matmul %75, %76, %cst_28 {dimension_numbers = #tpu.dot_dimension_numbers<[1], [0], [0], [1], [0, 0, 1, 1], [], []>} : vector<16x32xf32>, vector<32x32xf32>, vector<16x32xf32> -> vector<16x32xf32>
    %78 = vector.broadcast %2 : vector<1x32xf32> to vector<16x32xf32>
    %79 = arith.addf %77, %78 : vector<16x32xf32>
    %80 = math.tanh %79 : vector<16x32xf32>
    %81 = vector.extract_strided_slice %80 {offsets = [0, 0], sizes = [8, 32], strides = [1, 1]} : vector<16x32xf32> to vector<8x32xf32>
    %82 = vector.extract_strided_slice %80 {offsets = [8, 0], sizes = [8, 32], strides = [1, 1]} : vector<16x32xf32> to vector<8x32xf32>
    %83 = tpu.iota {dimensions = array<i32: 0>} : vector<64x1xi32>
    %c9_i32 = arith.constant 9 : i32
    %c0_i32 = arith.constant 0 : i32
    %84 = arith.cmpi eq, %c9_i32, %c0_i32 : i32
    %c1_i32 = arith.constant 1 : i32
    %85 = arith.select %84, %c1_i32, %c9_i32 : i32
    %86 = vector.broadcast %85 : i32 to vector<64x1xi32>
    %87 = arith.remsi %83, %86 : vector<64x1xi32>
    %c0_i32_29 = arith.constant 0 : i32
    %88 = vector.broadcast %c0_i32_29 : i32 to vector<64x1xi32>
    %89 = arith.cmpi ne, %87, %88 : vector<64x1xi32>
    %c0_i32_30 = arith.constant 0 : i32
    %90 = vector.broadcast %c0_i32_30 : i32 to vector<64x1xi32>
    %91 = arith.cmpi slt, %87, %90 : vector<64x1xi32>
    %c0_i32_31 = arith.constant 0 : i32
    %92 = arith.cmpi slt, %85, %c0_i32_31 : i32
    %93 = vector.broadcast %92 : i1 to vector<64x1xi1>
    %94 = vector.broadcast %93 : vector<64x1xi1> to vector<64x1xi1>
    %95 = arith.xori %91, %94 : vector<64x1xi1>
    %96 = arith.andi %95, %89 : vector<64x1xi1>
    %97 = vector.broadcast %85 : i32 to vector<64x1xi32>
    %98 = arith.addi %87, %97 : vector<64x1xi32>
    %99 = arith.select %96, %98, %87 : vector<64x1xi1>, vector<64x1xi32>
    %c0_i32_32 = arith.constant 0 : i32
    %100 = vector.broadcast %c0_i32_32 : i32 to vector<64x1xi32>
    %101 = arith.cmpi eq, %99, %100 : vector<64x1xi32>
    %102 = vector.shape_cast %81 : vector<8x32xf32> to vector<1x8x32xf32>
    %103 = vector.shape_cast %102 : vector<1x8x32xf32> to vector<1x8x32xf32>
    %104 = vector.broadcast %103 : vector<1x8x32xf32> to vector<8x8x32xf32>
    %105 = vector.shape_cast %104 : vector<8x8x32xf32> to vector<64x32xf32>
    %106 = vector.shape_cast %82 : vector<8x32xf32> to vector<1x8x32xf32>
    %107 = vector.shape_cast %106 : vector<1x8x32xf32> to vector<1x8x32xf32>
    %108 = vector.broadcast %107 : vector<1x8x32xf32> to vector<8x8x32xf32>
    %109 = vector.shape_cast %108 : vector<8x8x32xf32> to vector<64x32xf32>
    %110 = vector.shape_cast %101 : vector<64x1xi1> to vector<64x1xi1>
    %111 = vector.broadcast %110 : vector<64x1xi1> to vector<64x32xi1>
    %112 = arith.select %111, %109, %105 : vector<64x32xi1>, vector<64x32xf32>
    %113 = arith.mulf %72, %112 : vector<64x32xf32>
    %c0_33 = arith.constant 0 : index
    %c0_34 = arith.constant 0 : index
    %114 = vector.load %arg8[%c0_33, %c0_34] : memref<64x32xf32, #tpu.memory_space<vmem>>, vector<64x32xf32>
    tpu.vector_store %arg8[%c0_33, %c0_34], %113 {strides = array<i32>} : memref<64x32xf32, #tpu.memory_space<vmem>>, vector<64x32xf32>,
    return
  }
}

</mosaic_0001>

<llo_original>
// kernel: interaction_gate_forward.1
$region0: #{interaction_gate_forward.1}
  #allocation0 [shape = 'u32[]', space=smem, size = 0x4, offset = 0x4, fixed_abs, tag = 'smem constant byte address 0x4 - core index']
  #allocation1 [shape = 'u32[144,128]{1,0:T(1,128)}', space=vmem, size = 0x12000, scoped, tag = 'internal scratch']
  %s0 = inlined_call_operand.vmem [shape: f32[8,2], index: 0, kind: input, shape index: {}]
  %s1 = inlined_call_operand.vmem [shape: f32[8,2], index: 1, kind: input, shape index: {}]
  %s2 = inlined_call_operand.vmem [shape: f32[8,32], index: 2, kind: input, shape index: {}]
  %s3 = inlined_call_operand.hbm [shape: f32[8,32], index: 3, kind: input, shape index: {}]
  %s4 = inlined_call_operand.hbm [shape: f32[8,16], index: 4, kind: input, shape index: {}]
  %s5 = inlined_call_operand.hbm [shape: f32[16,32], index: 5, kind: input, shape index: {}]
  %s6 = inlined_call_operand.vmem [shape: f32[32,32], index: 6, kind: input, shape index: {}]
  %s7 = inlined_call_operand.vmem [shape: f32[3,32], index: 7, kind: input, shape index: {}]
  %s8 = inlined_call_operand.hbm [shape: f32[64,32], index: 8, kind: output, shape index: {}]
  %s9 = sld [smem:[#allocation0]]
  $region54: #{interaction_gate_forward.1} parent=0
    _
  %s11 = ssub.s32 1, %s9
  %s12 = scalar_select 0, %s11, %s9
  $region1: #{interaction_gate_forward.1} parent=0
    #allocation2 [shape = 'u8[4096]{0}', space=vmem, size = 0x1000, scoped, tag = 'input window, operand 3, single buffered']
    #allocation3 [shape = 's32[1]{0}', space=sflag, size = 0x4, scoped, tag = 'scoped memory for interaction_gate_forward.1']
    #allocation4 [shape = 's32[1]{0}', space=sflag, size = 0x4, scoped, tag = 'scoped memory for interaction_gate_forward.1']
    #allocation5 [shape = 'u8[4096]{0}', space=vmem, size = 0x1000, scoped, tag = 'input window, operand 4, single buffered']
    #allocation6 [shape = 's32[1]{0}', space=sflag, size = 0x4, scoped, tag = 'scoped memory for interaction_gate_forward.1']
    #allocation7 [shape = 'u8[8192]{0}', space=vmem, size = 0x2000, scoped, tag = 'input window, operand 5, single buffered']
    #allocation8 [shape = 'u8[32768]{0}', space=vmem, size = 0x8000, scoped, tag = 'output window, operand 0, single buffered']
    %13 = vsyncpa [#allocation3], 0
    %14 = vsyncpa [#allocation6], 0
    %15 = vsyncpa [#allocation4], 0
    // Predicated region
    $region2: #{interaction_gate_forward.1} parent=1 // pred_check
      _
    $region3: #{interaction_gate_forward.1} parent=1 // pred_check_branch
      %17 = sbr.rel (0) target = $region5
    $region4: #{interaction_gate_forward.1} parent=1 // pred_region
      _
    $region5: #{interaction_gate_forward.1} parent=1 // pred_fallthru
      _
    // Predicated region
    $region6: #{interaction_gate_forward.1} parent=1 // pred_check
      _
    $region7: #{interaction_gate_forward.1} parent=1 // pred_check_branch
      %19 = sbr.rel (0) target = $region9
    $region8: #{interaction_gate_forward.1} parent=1 // pred_region
      _
    $region9: #{interaction_gate_forward.1} parent=1 // pred_fallthru
      _
    // Predicated region
    $region10: #{interaction_gate_forward.1} parent=1 // pred_check
      _
    $region11: #{interaction_gate_forward.1} parent=1 // pred_check_branch
      %21 = sbr.rel (0) target = $region13
    $region12: #{interaction_gate_forward.1} parent=1 // pred_region
      _
    $region13: #{interaction_gate_forward.1} parent=1 // pred_fallthru
      _
    // Predicated region
    $region14: #{interaction_gate_forward.1} parent=1 // pred_check
      _
    $region15: #{interaction_gate_forward.1} parent=1 // pred_check_branch
      %23 = sbr.rel (0) target = $region17
    $region16: #{interaction_gate_forward.1} parent=1 // pred_region
      %s25 = ssub.s32 128, 128
      %26 = vsyncadd [#allocation3], %s25
      %s28 = sshll.u32 [#allocation2], 4
      %s29 = int_to_ptr.vmem [resolvable:$true] %s28
      %31 = dma.hbm_to_vmem [thread:$0]  %s3, 128, %s29, [#allocation3]
    $region17: #{interaction_gate_forward.1} parent=1 // pred_fallthru
      _
    // Predicated region
    $region18: #{interaction_gate_forward.1} parent=1 // pred_check
      _
    $region19: #{interaction_gate_forward.1} parent=1 // pred_check_branch
      %33 = sbr.rel (0) target = $region21
    $region20: #{interaction_gate_forward.1} parent=1 // pred_region
      %s35 = ssub.s32 128, 128
      %36 = vsyncadd [#allocation6], %s35
      %s38 = sshll.u32 [#allocation5], 4
      %s39 = int_to_ptr.vmem [resolvable:$true] %s38
      %41 = dma.hbm_to_vmem [thread:$0]  %s4, 128, %s39, [#allocation6]
    $region21: #{interaction_gate_forward.1} parent=1 // pred_fallthru
      _
    // Predicated region
    $region22: #{interaction_gate_forward.1} parent=1 // pred_check
      _
    $region23: #{interaction_gate_forward.1} parent=1 // pred_check_branch
      %43 = sbr.rel (0) target = $region25
    $region24: #{interaction_gate_forward.1} parent=1 // pred_region
      %s45 = ssub.s32 256, 256
      %46 = vsyncadd [#allocation6], %s45
      %s47 = sshll.u32 [#allocation7], 4
      %s48 = int_to_ptr.vmem [resolvable:$true] %s47
      %53 = dma.hbm_to_vmem [thread:$0]  %s5, 256, %s48, [#allocation6], 128, 128, 8
    $region25: #{interaction_gate_forward.1} parent=1 // pred_fallthru
      _
    // Predicated region
    $region26: #{interaction_gate_forward.1} parent=1 // pred_check
      _
    $region27: #{interaction_gate_forward.1} parent=1 // pred_check_branch
      %55 = sbr.rel (0) target = $region29
    $region28: #{interaction_gate_forward.1} parent=1 // pred_region
      _
    $region29: #{interaction_gate_forward.1} parent=1 // pred_fallthru
      _
    // Predicated region
    $region30: #{interaction_gate_forward.1} parent=1 // pred_check
      _
    $region31: #{interaction_gate_forward.1} parent=1 // pred_check_branch
      %57 = sbr.rel (0) target = $region33
    $region32: #{interaction_gate_forward.1} parent=1 // pred_region
      _
    $region33: #{interaction_gate_forward.1} parent=1 // pred_fallthru
      _
    // Predicated region
    $region34: #{interaction_gate_forward.1} parent=1 // pred_check
      _
    $region35: #{interaction_gate_forward.1} parent=1 // pred_check_branch
      %59 = sbr.rel (0) target = $region37
    $region36: #{interaction_gate_forward.1} parent=1 // pred_region
      %60 = dma.done [#allocation3], 128
    $region37: #{interaction_gate_forward.1} parent=1 // pred_fallthru
      _
    // Predicated region
    $region38: #{interaction_gate_forward.1} parent=1 // pred_check
      _
    $region39: #{interaction_gate_forward.1} parent=1 // pred_check_branch
      %62 = sbr.rel (0) target = $region41
    $region40: #{interaction_gate_forward.1} parent=1 // pred_region
      %63 = dma.done [#allocation6], 128
    $region41: #{interaction_gate_forward.1} parent=1 // pred_fallthru
      _
    // Predicated region
    $region42: #{interaction_gate_forward.1} parent=1 // pred_check
      _
    $region43: #{interaction_gate_forward.1} parent=1 // pred_check_branch
      %65 = sbr.rel (0) target = $region45
    $region44: #{interaction_gate_forward.1} parent=1 // pred_region
      %66 = dma.done [#allocation6], 256
    $region45: #{interaction_gate_forward.1} parent=1 // pred_fallthru
      _
    %v67 = vld [vmem:[%s7] sm:$0x1]
    %v68 = vld [vmem:[%s7 + $0x1] sm:$0x1]
    %v69 = vld [vmem:[%s7 + $0x2] sm:$0x1]
    %v70 = vld [vmem:[%s0] sm:$0xff]
    %v71 = vld [vmem:[%s1] sm:$0xff]
    %v72 = vld [vmem:[#allocation5] sm:$0x1]
    %74 = vset.pattern.permute.xlu0 0
    %75 = vperm.xlu0 %74, %v70
    %v76 = vpop.permute.xlu0 %75
    %v78 = vlaneseq
    %v79 = vshrl.u32 %v78, 7
    %v80 = vsub.s32 0, %v79
    %v81 = vrot.slane %v72, %v80
    %v82 = vmul.f32 %v76, %v81
    %v83 = vld [vmem:[#allocation5 + $0x1] sm:$0x1]
    %84 = vset.pattern.permute.xlu0 1
    %85 = vperm.xlu0 %84, %v70
    %v86 = vpop.permute.xlu0 %85
    %v88 = vlaneseq
    %v89 = vshrl.u32 %v88, 7
    %v90 = vsub.s32 0, %v89
    %v91 = vrot.slane %v83, %v90
    %v92 = vmul.f32 %v86, %v91
    %v93 = vadd.f32 %v82, %v92
    %v94 = vld [vmem:[#allocation5 + $0x2] sm:$0x1]
    %96 = vset.pattern.permute.xlu0 0
    %97 = vperm.xlu0 %96, %v71
    %v98 = vpop.permute.xlu0 %97
    %v100 = vlaneseq
    %v101 = vshrl.u32 %v100, 7
    %v102 = vsub.s32 0, %v101
    %v103 = vrot.slane %v94, %v102
    %v104 = vmul.f32 %v98, %v103
    %v105 = vadd.f32 %v93, %v104
    %v106 = vld [vmem:[#allocation5 + $0x3] sm:$0x1]
    %107 = vset.pattern.permute.xlu0 1
    %108 = vperm.xlu0 %107, %v71
    %v109 = vpop.permute.xlu0 %108
    %v111 = vlaneseq
    %v112 = vshrl.u32 %v111, 7
    %v113 = vsub.s32 0, %v112
    %v114 = vrot.slane %v106, %v113
    %v115 = vmul.f32 %v109, %v114
    %v116 = vadd.f32 %v105, %v115
    %v117 = vld [vmem:[#allocation5 + $0x4] sm:$0x1]
    %v118 = vlaneseq
    %v119 = vshrl.u32 %v118, 7
    %v120 = vsub.s32 0, %v119
    %v121 = vrot.slane %v117, %v120
    %v122 = vmul.f32 %v76, %v121
    %v123 = vld [vmem:[#allocation5 + $0x5] sm:$0x1]
    %v124 = vlaneseq
    %v125 = vshrl.u32 %v124, 7
    %v126 = vsub.s32 0, %v125
    %v127 = vrot.slane %v123, %v126
    %v128 = vmul.f32 %v86, %v127
    %v129 = vadd.f32 %v122, %v128
    %v130 = vld [vmem:[#allocation5 + $0x6] sm:$0x1]
    %v131 = vlaneseq
    %v132 = vshrl.u32 %v131, 7
    %v133 = vsub.s32 0, %v132
    %v134 = vrot.slane %v130, %v133
    %v135 = vmul.f32 %v98, %v134
    %v136 = vadd.f32 %v129, %v135
    %v137 = vld [vmem:[#allocation5 + $0x7] sm:$0x1]
    %v138 = vlaneseq
    %v139 = vshrl.u32 %v138, 7
    %v140 = vsub.s32 0, %v139
    %v141 = vrot.slane %v137, %v140
    %v142 = vmul.f32 %v109, %v141
    %v143 = vadd.f32 %v136, %v142
    %v145 = vcombine.high %v143, %v143
    %v147 = vunpack.c.l.s4 1966171168
    %v148 = vunpack.c.0.s8 %v147
    %v149 = vlaneseq
    %v150 = vshrl.u32 %v149, 7
    %v151 = vsub.s32 %v148, %v150
    %v152 = vrot.slane %v143, %v151
    %v154 = vunpack.c.l.s4 1966171168
    %v155 = vunpack.c.0.s8 %v154
    %v156 = vlaneseq
    %v157 = vshrl.u32 %v156, 7
    %v158 = vsub.s32 %v155, %v157
    %v159 = vrot.slane %v145, %v158
    %v160 = vcombine.high %v152, %v152
    %v161 = vcombine.high %v159, %v159
    %v163 = vunpack.c.l.s4 1966171168
    %v164 = vunpack.c.0.s8 %v163
    %v165 = vlaneseq
    %v166 = vshrl.u32 %v165, 7
    %v167 = vsub.s32 %v164, %v166
    %v168 = vrot.slane %v152, %v167
    %v170 = vunpack.c.l.s4 1966171168
    %v171 = vunpack.c.0.s8 %v170
    %v172 = vlaneseq
    %v173 = vshrl.u32 %v172, 7
    %v174 = vsub.s32 %v171, %v173
    %v175 = vrot.slane %v159, %v174
    %v177 = vunpack.c.l.s4 1966171168
    %v178 = vunpack.c.0.s8 %v177
    %v179 = vlaneseq
    %v180 = vshrl.u32 %v179, 7
    %v181 = vsub.s32 %v178, %v180
    %v182 = vrot.slane %v160, %v181
    %v184 = vunpack.c.l.s4 1966171168
    %v185 = vunpack.c.0.s8 %v184
    %v186 = vlaneseq
    %v187 = vshrl.u32 %v186, 7
    %v188 = vsub.s32 %v185, %v187
    %v189 = vrot.slane %v161, %v188
    %v190 = vcombine.high %v168, %v168
    %v191 = vcombine.high %v175, %v175
    %v192 = vcombine.high %v182, %v182
    %v193 = vcombine.high %v189, %v189
    %v194 = vlaneseq
    %v195 = vshrl.u32 %v194, 7
    %v196 = vsub.s32 0, %v195
    %v197 = vrot.slane %v168, %v196
    %v198 = vlaneseq
    %v199 = vshrl.u32 %v198, 7
    %v200 = vsub.s32 0, %v199
    %v201 = vrot.slane %v182, %v200
    %v202 = vlaneseq
    %v203 = vshrl.u32 %v202, 7
    %v204 = vsub.s32 0, %v203
    %v205 = vrot.slane %v190, %v204
    %v206 = vlaneseq
    %v207 = vshrl.u32 %v206, 7
    %v208 = vsub.s32 0, %v207
    %v209 = vrot.slane %v192, %v208
    %v210 = vlaneseq
    %v211 = vshrl.u32 %v210, 7
    %v212 = vsub.s32 0, %v211
    %v213 = vrot.slane %v175, %v212
    %v214 = vlaneseq
    %v215 = vshrl.u32 %v214, 7
    %v216 = vsub.s32 0, %v215
    %v217 = vrot.slane %v189, %v216
    %v218 = vlaneseq
    %v219 = vshrl.u32 %v218, 7
    %v220 = vsub.s32 0, %v219
    %v221 = vrot.slane %v191, %v220
    %v222 = vlaneseq
    %v223 = vshrl.u32 %v222, 7
    %v224 = vsub.s32 0, %v223
    %v225 = vrot.slane %v193, %v224
    %v234 = vadd.f32 %v116, %v197
    %v235 = vadd.f32 %v116, %v201
    %v236 = vadd.f32 %v116, %v205
    %v237 = vadd.f32 %v116, %v209
    %v238 = vadd.f32 %v116, %v213
    %v239 = vadd.f32 %v116, %v217
    %v240 = vadd.f32 %v116, %v221
    %v241 = vadd.f32 %v116, %v225
    %v242 = vlaneseq
    %v243 = vshrl.u32 %v242, 7
    %v244 = vsub.s32 0, %v243
    %v245 = vrot.slane %v67, %v244
    %v246 = vadd.f32 %v234, %v245
    %v247 = vadd.f32 %v235, %v245
    %v248 = vadd.f32 %v236, %v245
    %v249 = vadd.f32 %v237, %v245
    %v250 = vadd.f32 %v238, %v245
    %v251 = vadd.f32 %v239, %v245
    %v252 = vadd.f32 %v240, %v245
    %v253 = vadd.f32 %v241, %v245
    %v254 = vmax.f32 %v246, 0.0
    %v255 = vmax.f32 %v247, 0.0
    %v256 = vmax.f32 %v248, 0.0
    %v257 = vmax.f32 %v249, 0.0
    %v258 = vmax.f32 %v250, 0.0
    %v259 = vmax.f32 %v251, 0.0
    %v260 = vmax.f32 %v252, 0.0
    %v261 = vmax.f32 %v253, 0.0
    %v262 = vld [vmem:[#allocation7] sm:$0xff]
    %v263 = vld [vmem:[#allocation7 + $0x8] sm:$0xff]
    %v264 = vlaneseq
    %v265 = vshrl.u32 %v264, 7
    %v266 = vsub.s32 0, %v265
    %v267 = vrot.slane %v68, %v266
    %vm268 = vcmask 130048
    %v270 = vsel %vm268, %v254, 0
    %v273 = vsel %vm268, %v255, 0
    %v276 = vsel %vm268, %v256, 0
    %v279 = vsel %vm268, %v257, 0
    %v282 = vsel %vm268, %v258, 0
    %v285 = vsel %vm268, %v259, 0
    %v288 = vsel %vm268, %v260, 0
    %v291 = vsel %vm268, %v261, 0
    %293 = vmatprep.subr.mxu0 0.0
    %294 = vmatpush1.msra.mxu0 %v262
    %295 = vmatprep.subr.mxu0 0.0
    %296 = vmatpush1.msra.mxu0 %v263
    %297 = vmatprep.subr.mxu0 0.0
    %298 = vmatpush1.msra.mxu0 0.0
    %299 = vmatprep.subr.mxu0 0.0
    %300 = vmatpush1.msra.mxu0 0.0
    %301 = vmatprep.subr.mxu0 0.0
    %302 = vmatpush1.msra.mxu0 0.0
    %303 = vmatprep.subr.mxu0 0.0
    %304 = vmatpush1.msra.mxu0 0.0
    %305 = vmatprep.subr.mxu0 0.0
    %306 = vmatpush1.msra.mxu0 0.0
    %307 = vmatprep.subr.mxu0 0.0
    %308 = vmatpush1.msra.mxu0 0.0
    %309 = vmatprep.subr.mxu0 0.0
    %310 = vmatpush1.msra.mxu0 0.0
    %311 = vmatprep.subr.mxu0 0.0
    %312 = vmatpush1.msra.mxu0 0.0
    %313 = vmatprep.subr.mxu0 0.0
    %314 = vmatpush1.msra.mxu0 0.0
    %315 = vmatprep.subr.mxu0 0.0
    %316 = vmatpush1.msra.mxu0 0.0
    %317 = vmatprep.subr.mxu0 0.0
    %318 = vmatpush1.msra.mxu0 0.0
    %319 = vmatprep.subr.mxu0 0.0
    %320 = vmatpush1.msra.mxu0 0.0
    %321 = vmatprep.subr.mxu0 0.0
    %322 = vmatpush1.msra.mxu0 0.0
    %323 = vmatprep.subr.mxu0 0.0
    %324 = vmatpush1.msra.mxu0 0.0
    %325 = vmatprep.subr.mxu0 0.0
    %326 = vmatpush1.msra.mxu0 0.0
    %327 = vmatprep.subr.mxu0 0.0
    %328 = vmatpush1.msra.mxu0 0.0
    %329 = vmatprep.subr.mxu0 0.0
    %330 = vmatpush1.msra.mxu0 0.0
    %331 = vmatprep.subr.mxu0 0.0
    %332 = vmatpush1.msra.mxu0 0.0
    %333 = vmatprep.subr.mxu0 0.0
    %334 = vmatpush1.msra.mxu0 0.0
    %335 = vmatprep.subr.mxu0 0.0
    %336 = vmatpush1.msra.mxu0 0.0
    %337 = vmatprep.subr.mxu0 0.0
    %338 = vmatpush1.msra.mxu0 0.0
    %339 = vmatprep.subr.mxu0 0.0
    %340 = vmatpush1.msra.mxu0 0.0
    %341 = vmatprep.subr.mxu0 0.0
    %342 = vmatpush1.msra.mxu0 0.0
    %343 = vmatprep.subr.mxu0 0.0
    %344 = vmatpush1.msra.mxu0 0.0
    %345 = vmatprep.subr.mxu0 0.0
    %346 = vmatpush1.msra.mxu0 0.0
    %347 = vmatprep.subr.mxu0 0.0
    %348 = vmatpush1.msra.mxu0 0.0
    %349 = vmatprep.subr.mxu0 0.0
    %350 = vmatpush1.msra.mxu0 0.0
    %351 = vmatprep.subr.mxu0 0.0
    %352 = vmatpush1.msra.mxu0 0.0
    %353 = vmatprep.subr.mxu0 0.0
    %354 = vmatpush1.msra.mxu0 0.0
    %355 = vmatprep.subr.mxu0 0.0
    %356 = vmatpush1.msra.mxu0 0.0
    %357 = vmatprep.mubr.f32.mxu0 0.0
    %358 = vmatmul.mubr.f32.gmra.mrb[0].mxu0 %v270
    %v359 = vpop.f32.mrb[0].mxu0
    %v360 = vadd.f32 %v267, %v359
    %v361 = vpop.f32.mrb[0].mxu0
    %362 = vmatprep.mubr.f32.mxu0 0.0
    %363 = vmatmul.mubr.f32.gmra.mrb[0].mxu0 %v273
    %v364 = vpop.f32.mrb[0].mxu0
    %v365 = vadd.f32 %v267, %v364
    %v366 = vpop.f32.mrb[0].mxu0
    %367 = vmatprep.mubr.f32.mxu0 0.0
    %368 = vmatmul.mubr.f32.gmra.mrb[0].mxu0 %v276
    %v369 = vpop.f32.mrb[0].mxu0
    %v370 = vadd.f32 %v267, %v369
    %v371 = vpop.f32.mrb[0].mxu0
    %372 = vmatprep.mubr.f32.mxu0 0.0
    %373 = vmatmul.mubr.f32.gmra.mrb[0].mxu0 %v279
    %v374 = vpop.f32.mrb[0].mxu0
    %v375 = vadd.f32 %v267, %v374
    %v376 = vpop.f32.mrb[0].mxu0
    %377 = vmatprep.mubr.f32.mxu0 0.0
    %378 = vmatmul.mubr.f32.gmra.mrb[0].mxu0 %v282
    %v379 = vpop.f32.mrb[0].mxu0
    %v380 = vadd.f32 %v267, %v379
    %v381 = vpop.f32.mrb[0].mxu0
    %382 = vmatprep.mubr.f32.mxu0 0.0
    %383 = vmatmul.mubr.f32.gmra.mrb[0].mxu0 %v285
    %v384 = vpop.f32.mrb[0].mxu0
    %v385 = vadd.f32 %v267, %v384
    %v386 = vpop.f32.mrb[0].mxu0
    %387 = vmatprep.mubr.f32.mxu0 0.0
    %388 = vmatmul.mubr.f32.gmra.mrb[0].mxu0 %v288
    %v389 = vpop.f32.mrb[0].mxu0
    %v390 = vadd.f32 %v267, %v389
    %v391 = vpop.f32.mrb[0].mxu0
    %392 = vmatprep.mubr.f32.mxu0 0.0
    %393 = vmatmul.mubr.f32.gmra.mrb[0].mxu0 %v291
    %v394 = vpop.f32.mrb[0].mxu0
    %v395 = vadd.f32 %v267, %v394
    %v396 = vpop.f32.mrb[0].mxu0
    %397 = vdwg.mxu0
    %v398 = vxor.u32 %v360, 2147483648
    %v399 = vxor.u32 %v365, 2147483648
    %v400 = vxor.u32 %v370, 2147483648
    %v401 = vxor.u32 %v375, 2147483648
    %v402 = vxor.u32 %v380, 2147483648
    %v403 = vxor.u32 %v385, 2147483648
    %v404 = vxor.u32 %v390, 2147483648
    %v405 = vxor.u32 %v395, 2147483648
    %v406 = vmul.f32 %v398, 1.442695
    %v407 = vpow.pop %v406
    %v408 = vmul.f32 %v399, 1.442695
    %v409 = vpow.pop %v408
    %v410 = vmul.f32 %v400, 1.442695
    %v411 = vpow.pop %v410
    %v412 = vmul.f32 %v401, 1.442695
    %v413 = vpow.pop %v412
    %v414 = vmul.f32 %v402, 1.442695
    %v415 = vpow.pop %v414
    %v416 = vmul.f32 %v403, 1.442695
    %v417 = vpow.pop %v416
    %v418 = vmul.f32 %v404, 1.442695
    %v419 = vpow.pop %v418
    %v420 = vmul.f32 %v405, 1.442695
    %v421 = vpow.pop %v420
    %v422 = vadd.f32 %v407, 1.0
    %v423 = vadd.f32 %v409, 1.0
    %v424 = vadd.f32 %v411, 1.0
    %v425 = vadd.f32 %v413, 1.0
    %v426 = vadd.f32 %v415, 1.0
    %v427 = vadd.f32 %v417, 1.0
    %v428 = vadd.f32 %v419, 1.0
    %v429 = vadd.f32 %v421, 1.0
    %v430 = vrcp.pop %v422
    %v431 = vmul.f32 1.0, %v430
    %v432 = vrcp.pop %v423
    %v433 = vmul.f32 1.0, %v432
    %v434 = vrcp.pop %v424
    %v435 = vmul.f32 1.0, %v434
    %v436 = vrcp.pop %v425
    %v437 = vmul.f32 1.0, %v436
    %v438 = vrcp.pop %v426
    %v439 = vmul.f32 1.0, %v438
    %v440 = vrcp.pop %v427
    %v441 = vmul.f32 1.0, %v440
    %v442 = vrcp.pop %v428
    %v443 = vmul.f32 1.0, %v442
    %v444 = vrcp.pop %v429
    %v445 = vmul.f32 1.0, %v444
    %v446 = vld [vmem:[%s2] sm:$0xff]
    %v447 = vld [vmem:[#allocation2] sm:$0xff]
    %v448 = vld [vmem:[%s6] sm:$0xff]
    %v449 = vld [vmem:[%s6 + $0x8] sm:$0xff]
    %v450 = vld [vmem:[%s6 + $0x10] sm:$0xff]
    %v451 = vld [vmem:[%s6 + $0x18] sm:$0xff]
    %v452 = vlaneseq
    %v453 = vshrl.u32 %v452, 7
    %v454 = vsub.s32 0, %v453
    %v455 = vrot.slane %v69, %v454
    %vm456 = vcmask 261120
    %v458 = vsel %vm456, %v446, 0
    %v461 = vsel %vm456, %v447, 0
    %463 = vmatprep.subr.mxu0 0.0
    %464 = vmatpush1.msra.mxu0 %v448
    %465 = vmatprep.subr.mxu0 0.0
    %466 = vmatpush1.msra.mxu0 %v449
    %467 = vmatprep.subr.mxu0 0.0
    %468 = vmatpush1.msra.mxu0 %v450
    %469 = vmatprep.subr.mxu0 0.0
    %470 = vmatpush1.msra.mxu0 %v451
    %471 = vmatprep.subr.mxu0 0.0
    %472 = vmatpush1.msra.mxu0 0.0
    %473 = vmatprep.subr.mxu0 0.0
    %474 = vmatpush1.msra.mxu0 0.0
    %475 = vmatprep.subr.mxu0 0.0
    %476 = vmatpush1.msra.mxu0 0.0
    %477 = vmatprep.subr.mxu0 0.0
    %478 = vmatpush1.msra.mxu0 0.0
    %479 = vmatprep.subr.mxu0 0.0
    %480 = vmatpush1.msra.mxu0 0.0
    %481 = vmatprep.subr.mxu0 0.0
    %482 = vmatpush1.msra.mxu0 0.0
    %483 = vmatprep.subr.mxu0 0.0
    %484 = vmatpush1.msra.mxu0 0.0
    %485 = vmatprep.subr.mxu0 0.0
    %486 = vmatpush1.msra.mxu0 0.0
    %487 = vmatprep.subr.mxu0 0.0
    %488 = vmatpush1.msra.mxu0 0.0
    %489 = vmatprep.subr.mxu0 0.0
    %490 = vmatpush1.msra.mxu0 0.0
    %491 = vmatprep.subr.mxu0 0.0
    %492 = vmatpush1.msra.mxu0 0.0
    %493 = vmatprep.subr.mxu0 0.0
    %494 = vmatpush1.msra.mxu0 0.0
    %495 = vmatprep.subr.mxu0 0.0
    %496 = vmatpush1.msra.mxu0 0.0
    %497 = vmatprep.subr.mxu0 0.0
    %498 = vmatpush1.msra.mxu0 0.0
    %499 = vmatprep.subr.mxu0 0.0
    %500 = vmatpush1.msra.mxu0 0.0
    %501 = vmatprep.subr.mxu0 0.0
    %502 = vmatpush1.msra.mxu0 0.0
    %503 = vmatprep.subr.mxu0 0.0
    %504 = vmatpush1.msra.mxu0 0.0
    %505 = vmatprep.subr.mxu0 0.0
    %506 = vmatpush1.msra.mxu0 0.0
    %507 = vmatprep.subr.mxu0 0.0
    %508 = vmatpush1.msra.mxu0 0.0
    %509 = vmatprep.subr.mxu0 0.0
    %510 = vmatpush1.msra.mxu0 0.0
    %511 = vmatprep.subr.mxu0 0.0
    %512 = vmatpush1.msra.mxu0 0.0
    %513 = vmatprep.subr.mxu0 0.0
    %514 = vmatpush1.msra.mxu0 0.0
    %515 = vmatprep.subr.mxu0 0.0
    %516 = vmatpush1.msra.mxu0 0.0
    %517 = vmatprep.subr.mxu0 0.0
    %518 = vmatpush1.msra.mxu0 0.0
    %519 = vmatprep.subr.mxu0 0.0
    %520 = vmatpush1.msra.mxu0 0.0
    %521 = vmatprep.subr.mxu0 0.0
    %522 = vmatpush1.msra.mxu0 0.0
    %523 = vmatprep.subr.mxu0 0.0
    %524 = vmatpush1.msra.mxu0 0.0
    %525 = vmatprep.subr.mxu0 0.0
    %526 = vmatpush1.msra.mxu0 0.0
    %527 = vmatprep.mubr.f32.mxu0 0.0
    %528 = vmatmul.mubr.f32.gmra.mrb[0].mxu0 %v458
    %v529 = vpop.f32.mrb[0].mxu0
    %v530 = vadd.f32 %v455, %v529
    %v531 = vpop.f32.mrb[0].mxu0
    %532 = vmatprep.mubr.f32.mxu0 0.0
    %533 = vmatmul.mubr.f32.gmra.mrb[0].mxu0 %v461
    %v534 = vpop.f32.mrb[0].mxu0
    %v535 = vadd.f32 %v455, %v534
    %v536 = vpop.f32.mrb[0].mxu0
    %537 = vdwg.mxu0
    %v538 = vtanh.pop %v530
    %v539 = vtanh.pop %v535
    %v540 = vlaneseq
    %v541 = vshrl.u32 %v540, 7
    %v542 = vadd.s32 %v541, 8
    %v543 = vadd.s32 %v541, 16
    %v544 = vadd.s32 %v541, 24
    %v545 = vadd.s32 %v541, 32
    %v546 = vadd.s32 %v541, 40
    %v547 = vadd.s32 %v541, 48
    %v548 = vadd.s32 %v541, 56
    %vm549 = vcmp.lt.s32.totalorder %v541, 0
    %v550 = vsub.s32 0, %v541
    %v551 = vsel %vm549, %v550, %v541
    %v552 = vmul.u32.u64.compose %v551, 3817748708
    %v553 = vextract.low.u32 %v552
    %v554 = vextract.high.u32 %v552
    %v555 = vshrl.u32 %v554, 3
    %v556 = vmul.u32 %v555, 9
    %v557 = vsub.s32 %v551, %v556
    %v558 = vsub.s32 0, %v557
    %v559 = vsel %vm549, %v558, %v557
    %vm560 = vcmp.lt.s32.totalorder %v542, 0
    %v561 = vsub.s32 0, %v542
    %v562 = vsel %vm560, %v561, %v542
    %v563 = vmul.u32.u64.compose %v562, 3817748708
    %v564 = vextract.low.u32 %v563
    %v565 = vextract.high.u32 %v563
    %v566 = vshrl.u32 %v565, 3
    %v567 = vmul.u32 %v566, 9
    %v568 = vsub.s32 %v562, %v567
    %v569 = vsub.s32 0, %v568
    %v570 = vsel %vm560, %v569, %v568
    %vm571 = vcmp.lt.s32.totalorder %v543, 0
    %v572 = vsub.s32 0, %v543
    %v573 = vsel %vm571, %v572, %v543
    %v574 = vmul.u32.u64.compose %v573, 3817748708
    %v575 = vextract.low.u32 %v574
    %v576 = vextract.high.u32 %v574
    %v577 = vshrl.u32 %v576, 3
    %v578 = vmul.u32 %v577, 9
    %v579 = vsub.s32 %v573, %v578
    %v580 = vsub.s32 0, %v579
    %v581 = vsel %vm571, %v580, %v579
    %vm582 = vcmp.lt.s32.totalorder %v544, 0
    %v583 = vsub.s32 0, %v544
    %v584 = vsel %vm582, %v583, %v544
    %v585 = vmul.u32.u64.compose %v584, 3817748708
    %v586 = vextract.low.u32 %v585
    %v587 = vextract.high.u32 %v585
    %v588 = vshrl.u32 %v587, 3
    %v589 = vmul.u32 %v588, 9
    %v590 = vsub.s32 %v584, %v589
    %v591 = vsub.s32 0, %v590
    %v592 = vsel %vm582, %v591, %v590
    %vm593 = vcmp.lt.s32.totalorder %v545, 0
    %v594 = vsub.s32 0, %v545
    %v595 = vsel %vm593, %v594, %v545
    %v596 = vmul.u32.u64.compose %v595, 3817748708
    %v597 = vextract.low.u32 %v596
    %v598 = vextract.high.u32 %v596
    %v599 = vshrl.u32 %v598, 3
    %v600 = vmul.u32 %v599, 9
    %v601 = vsub.s32 %v595, %v600
    %v602 = vsub.s32 0, %v601
    %v603 = vsel %vm593, %v602, %v601
    %vm604 = vcmp.lt.s32.totalorder %v546, 0
    %v605 = vsub.s32 0, %v546
    %v606 = vsel %vm604, %v605, %v546
    %v607 = vmul.u32.u64.compose %v606, 3817748708
    %v608 = vextract.low.u32 %v607
    %v609 = vextract.high.u32 %v607
    %v610 = vshrl.u32 %v609, 3
    %v611 = vmul.u32 %v610, 9
    %v612 = vsub.s32 %v606, %v611
    %v613 = vsub.s32 0, %v612
    %v614 = vsel %vm604, %v613, %v612
    %vm615 = vcmp.lt.s32.totalorder %v547, 0
    %v616 = vsub.s32 0, %v547
    %v617 = vsel %vm615, %v616, %v547
    %v618 = vmul.u32.u64.compose %v617, 3817748708
    %v619 = vextract.low.u32 %v618
    %v620 = vextract.high.u32 %v618
    %v621 = vshrl.u32 %v620, 3
    %v622 = vmul.u32 %v621, 9
    %v623 = vsub.s32 %v617, %v622
    %v624 = vsub.s32 0, %v623
    %v625 = vsel %vm615, %v624, %v623
    %vm626 = vcmp.lt.s32.totalorder %v548, 0
    %v627 = vsub.s32 0, %v548
    %v628 = vsel %vm626, %v627, %v548
    %v629 = vmul.u32.u64.compose %v628, 3817748708
    %v630 = vextract.low.u32 %v629
    %v631 = vextract.high.u32 %v629
    %v632 = vshrl.u32 %v631, 3
    %v633 = vmul.u32 %v632, 9
    %v634 = vsub.s32 %v628, %v633
    %v635 = vsub.s32 0, %v634
    %v636 = vsel %vm626, %v635, %v634
    %vm637 = vcmp.ne.s32.totalorder %v559, 0
    %vm638 = vcmp.ne.s32.totalorder %v570, 0
    %vm639 = vcmp.ne.s32.totalorder %v581, 0
    %vm640 = vcmp.ne.s32.totalorder %v592, 0
    %vm641 = vcmp.ne.s32.totalorder %v603, 0
    %vm642 = vcmp.ne.s32.totalorder %v614, 0
    %vm643 = vcmp.ne.s32.totalorder %v625, 0
    %vm644 = vcmp.ne.s32.totalorder %v636, 0
    %vm645 = vcmp.lt.s32.totalorder %v559, 0
    %vm646 = vcmp.lt.s32.totalorder %v570, 0
    %vm647 = vcmp.lt.s32.totalorder %v581, 0
    %vm648 = vcmp.lt.s32.totalorder %v592, 0
    %vm649 = vcmp.lt.s32.totalorder %v603, 0
    %vm650 = vcmp.lt.s32.totalorder %v614, 0
    %vm651 = vcmp.lt.s32.totalorder %v625, 0
    %vm652 = vcmp.lt.s32.totalorder %v636, 0
    %vm653 = vmand %vm645, %vm637
    %vm654 = vmand %vm646, %vm638
    %vm655 = vmand %vm647, %vm639
    %vm656 = vmand %vm648, %vm640
    %vm657 = vmand %vm649, %vm641
    %vm658 = vmand %vm650, %vm642
    %vm659 = vmand %vm651, %vm643
    %vm660 = vmand %vm652, %vm644
    %v661 = vadd.s32 %v559, 9
    %v662 = vadd.s32 %v570, 9
    %v663 = vadd.s32 %v581, 9
    %v664 = vadd.s32 %v592, 9
    %v665 = vadd.s32 %v603, 9
    %v666 = vadd.s32 %v614, 9
    %v667 = vadd.s32 %v625, 9
    %v668 = vadd.s32 %v636, 9
    %v669 = vsel %vm653, %v661, %v559
    %v670 = vsel %vm654, %v662, %v570
    %v671 = vsel %vm655, %v663, %v581
    %v672 = vsel %vm656, %v664, %v592
    %v673 = vsel %vm657, %v665, %v603
    %v674 = vsel %vm658, %v666, %v614
    %v675 = vsel %vm659, %v667, %v625
    %v676 = vsel %vm660, %v668, %v636
    %vm677 = vcmp.eq.s32.totalorder %v669, 0
    %vm678 = vcmp.eq.s32.totalorder %v670, 0
    %vm679 = vcmp.eq.s32.totalorder %v671, 0
    %vm680 = vcmp.eq.s32.totalorder %v672, 0
    %vm681 = vcmp.eq.s32.totalorder %v673, 0
    %vm682 = vcmp.eq.s32.totalorder %v674, 0
    %vm683 = vcmp.eq.s32.totalorder %v675, 0
    %vm684 = vcmp.eq.s32.totalorder %v676, 0
    %v685 = vsel %vm677, 1, 0
    %v686 = vsel %vm678, 1, 0
    %v687 = vsel %vm679, 1, 0
    %v688 = vsel %vm680, 1, 0
    %v689 = vsel %vm681, 1, 0
    %v690 = vsel %vm682, 1, 0
    %v691 = vsel %vm683, 1, 0
    %v692 = vsel %vm684, 1, 0
    %vm693 = vcmp.eq.s32.totalorder %v685, 1
    %vm694 = vcmp.eq.s32.totalorder %v686, 1
    %vm695 = vcmp.eq.s32.totalorder %v687, 1
    %vm696 = vcmp.eq.s32.totalorder %v688, 1
    %vm697 = vcmp.eq.s32.totalorder %v689, 1
    %vm698 = vcmp.eq.s32.totalorder %v690, 1
    %vm699 = vcmp.eq.s32.totalorder %v691, 1
    %vm700 = vcmp.eq.s32.totalorder %v692, 1
    %v701 = vsel %vm693, %v539, %v538
    %v702 = vsel %vm694, %v539, %v538
    %v703 = vsel %vm695, %v539, %v538
    %v704 = vsel %vm696, %v539, %v538
    %v705 = vsel %vm697, %v539, %v538
    %v706 = vsel %vm698, %v539, %v538
    %v707 = vsel %vm699, %v539, %v538
    %v708 = vsel %vm700, %v539, %v538
    %v709 = vmul.f32 %v431, %v701
    %v710 = vmul.f32 %v433, %v702
    %v711 = vmul.f32 %v435, %v703
    %v712 = vmul.f32 %v437, %v704
    %v713 = vmul.f32 %v439, %v705
    %v714 = vmul.f32 %v441, %v706
    %v715 = vmul.f32 %v443, %v707
    %v716 = vmul.f32 %v445, %v708
    %717 = vst.msk [vmem:[#allocation8] sm:$0xff] %vm456, %v709
    %718 = vst.msk [vmem:[#allocation8 + $0x8] sm:$0xff] %vm456, %v710
    %719 = vst.msk [vmem:[#allocation8 + $0x10] sm:$0xff] %vm456, %v711
    %720 = vst.msk [vmem:[#allocation8 + $0x18] sm:$0xff] %vm456, %v712
    %721 = vst.msk [vmem:[#allocation8 + $0x20] sm:$0xff] %vm456, %v713
    %722 = vst.msk [vmem:[#allocation8 + $0x28] sm:$0xff] %vm456, %v714
    %723 = vst.msk [vmem:[#allocation8 + $0x30] sm:$0xff] %vm456, %v715
    %724 = vst.msk [vmem:[#allocation8 + $0x38] sm:$0xff] %vm456, %v716
    // Predicated region
    $region46: #{interaction_gate_forward.1} parent=1 // pred_check
      _
    $region47: #{interaction_gate_forward.1} parent=1 // pred_check_branch
      %726 = sbr.rel (0) target = $region49
    $region48: #{interaction_gate_forward.1} parent=1 // pred_region
      %s728 = ssub.s32 1024, 1024
      %729 = vsyncadd [#allocation4], %s728
      %s730 = sshll.u32 [#allocation8], 4
      %s731 = int_to_ptr.vmem [resolvable:$true] %s730
      %736 = dma.vmem_to_hbm [thread:$0]  %s731, 1024, %s8, [#allocation4], 128, 128, 8
    $region49: #{interaction_gate_forward.1} parent=1 // pred_fallthru
      _
    // Predicated region
    $region50: #{interaction_gate_forward.1} parent=1 // pred_check
      _
    $region51: #{interaction_gate_forward.1} parent=1 // pred_check_branch
      %738 = sbr.rel (0) target = $region53
    $region52: #{interaction_gate_forward.1} parent=1 // pred_region
      %739 = dma.done [#allocation4], 1024
    $region53: #{interaction_gate_forward.1} parent=1 // pred_fallthru
      _
    %740 = vsyncpa [#allocation3], 1
    %741 = vsyncpa [#allocation6], 1
    %742 = vsyncpa [#allocation4], 1

</llo_original>
